<compile_context>
chip_gen: v7x
topology: tpu7x:2x2x1
jax: 0.10.0
libtpu: 0.0.40
codegen_flags: <defaults>
</compile_context>

<pallas_src>
import numpy as np
import jax
import jax.numpy as jnp
from jax.experimental import pallas as pl
from jax.experimental.pallas import tpu as pltpu


# ----------------------------------------------------------------------------
# Glue: PIL-style bicubic interpolation weight matrices (static, numpy).
# ----------------------------------------------------------------------------
def _cubic_filter(x, a=-0.5):
    x = np.abs(x)
    return np.where(
        x <= 1.0,
        (a + 2.0) * x**3 - (a + 3.0) * x**2 + 1.0,
        np.where(x < 2.0, a * x**3 - 5.0 * a * x**2 + 8.0 * a * x - 4.0 * a, 0.0),
    )


def _bicubic_resize_matrix(in_size, out_size):
    """(out_size, in_size) row-stochastic bicubic resampling matrix (PIL semantics)."""
    scale = in_size / out_size
    filt_scale = max(scale, 1.0)  # antialias: widen the kernel when downscaling
    centers = (np.arange(out_size, dtype=np.float64) + 0.5) * scale       # (out,)
    taps = np.arange(in_size, dtype=np.float64) + 0.5                      # (in,)
    dist = (taps[None, :] - centers[:, None]) / filt_scale                 # (out, in)
    w = _cubic_filter(dist)
    w = w / np.maximum(w.sum(axis=1, keepdims=True), 1e-12)
    return w.astype(np.float32)


# ----------------------------------------------------------------------------
# Kernel: one channel x one output-row block per grid step.
# ----------------------------------------------------------------------------
def _transform_kernel(scale_ref, bias_ref, wh_ref, wwt_ref, x_ref, o_ref):
    c = pl.program_id(0)

    # x_ref: (H, W) int8 holding (pixel - 128); small integers are exact in bf16.
    x = x_ref[...].astype(jnp.bfloat16)

    # Vertical resample/crop rows first, then horizontal; bf16 MXU, f32 accumulate.
    # TODO(synk): bf16 weights/intermediate can shift a pixel by ~1 LSB of 1/255
    # vs the f32 PIL reference near bicubic-overshoot regions.
    t = jnp.dot(wh_ref[...], x, preferred_element_type=jnp.float32)        # (S_blk, W)
    acc = jnp.dot(t.astype(jnp.bfloat16), wwt_ref[...],
                  preferred_element_type=jnp.float32)                      # (S_blk, S)

    # Undo the -128 centering (row-stochastic resample weights pass a constant
    # offset straight through), then re-quantize like PIL (round half-up,
    # clamp to the uint8 range).
    # TODO(synk): PIL clips to uint8 after EACH resample pass; we quantize once.
    res = jnp.clip(jnp.floor(acc + 128.5), 0.0, 255.0)

    # ConvertImageDtype(/255) + Normalize fused into a single per-channel FMA.
    o_ref[...] = res * scale_ref[c] - bias_ref[c]


def _vmem_limit_bytes(H, W, S, S_blk):
    x_in = H * W                        # int8 channel slab
    wh_in = S_blk * H * 2               # bf16
    wwt_in = W * S * 2                  # bf16
    out_t = S_blk * S * 4               # f32 output tile
    temps = H * W * 2 + S_blk * W * 6 + S_blk * S * 8   # bf16 x, t (f32+bf16), acc/res
    need = 2 * (x_in + wh_in + wwt_in + out_t) + temps  # double-buffered pipeline bufs
    need = int(need * 1.5) + (4 << 20)                  # headroom
    # Stay under v7x's 64 MiB physical VMEM; raise above the per-gen defaults
    # only as far as the footprint requires.
    return min(max(need, 16 << 20), 64 << 20)


def transform_forward(x_u8, image_size, mean, std):
    """Resize(bicubic, shortest-edge) + CenterCrop + ConvertImageDtype + Normalize."""
    C, H, W = x_u8.shape
    S = int(image_size)

    # torchvision Resize([S]): shortest edge -> S, keep aspect ratio.
    # TODO(synk): verify trunc-vs-round of the long edge against the installed torchvision.
    if H <= W:
        h_r, w_r = S, int(S * W / H)
    else:
        h_r, w_r = int(S * H / W), S

    wh_full = _bicubic_resize_matrix(H, h_r)     # (h_r, H)
    ww_full = _bicubic_resize_matrix(W, w_r)     # (w_r, W)

    # torchvision CenterCrop(S): keep only the resample rows in the crop window.
    top = int(round((h_r - S) / 2.0))
    left = int(round((w_r - S) / 2.0))
    wh = jnp.asarray(wh_full[top:top + S], dtype=jnp.bfloat16)        # (S, H)
    wwt = jnp.asarray(ww_full[left:left + S].T, dtype=jnp.bfloat16)   # (W, S)

    # Fused normalization constants: res*scale - bias == ((res/255) - mean)/std
    mean_np = np.asarray(mean, dtype=np.float32)
    std_np = np.asarray(std, dtype=np.float32)
    scale = jnp.asarray(1.0 / (255.0 * std_np), dtype=jnp.float32)    # (C,)
    bias = jnp.asarray(mean_np / std_np, dtype=jnp.float32)           # (C,)

    # Pre-center on the host: (u8 ^ 0x80) bit-cast to int8 == pixel - 128.
    # Keeps the image 8-bit into VMEM and removes any in-kernel sign fixup.
    x_i8 = jax.lax.bitcast_convert_type(
        jnp.bitwise_xor(x_u8, jnp.uint8(128)), jnp.int8)              # (C, H, W) i8

    # Grid: one channel per step; split the output rows in two when possible so
    # v7x's two TensorCores get an even number of parallel steps (C=3 alone
    # would give a 2:1 imbalance).  R=1 falls back to whole-output-per-channel.
    R = 2 if (S % 16 == 0 and S >= 16) else 1
    S_blk = S // R

    kernel_fn = pl.pallas_call(
        _transform_kernel,
        out_shape=jax.ShapeDtypeStruct((C, S, S), jnp.float32),
        grid=(C, R),
        in_specs=[
            pl.BlockSpec(memory_space=pltpu.MemorySpace.SMEM),         # scale (C,)
            pl.BlockSpec(memory_space=pltpu.MemorySpace.SMEM),         # bias  (C,)
            pl.BlockSpec((S_blk, H), lambda c, r: (r, 0)),             # Wh row block (bf16)
            pl.BlockSpec((W, S), lambda c, r: (0, 0)),                 # Ww^T whole (bf16)
            pl.BlockSpec((None, H, W), lambda c, r: (c, 0, 0)),        # x channel slab (i8)
        ],
        out_specs=pl.BlockSpec((None, S_blk, S), lambda c, r: (c, r, 0)),
        compiler_params=pltpu.CompilerParams(
            dimension_semantics=("parallel", "parallel"),
            vmem_limit_bytes=_vmem_limit_bytes(H, W, S, S_blk),
        ),
    )
    return kernel_fn(scale, bias, wh, wwt, x_i8)


if __name__ == "__main__":
    key = jax.random.PRNGKey(0)
    C, H_in, W_in = 3, 24, 32
    image_size = 16

    # deterministic synthetic uint8 "image" (channel-first CHW)
    x = jax.random.randint(key, (C, H_in, W_in), 0, 256, dtype=jnp.int32).astype(jnp.uint8)

    # CLIP / BridgeTower normalization constants
    mean = (0.48145466, 0.4578275, 0.40821073)
    std = (0.26862954, 0.26130258, 0.27577711)

    out = transform_forward(x, image_size, mean, std)
    out = jax.block_until_ready(out)

    assert out.shape == (C, image_size, image_size)
    assert out.dtype == jnp.float32
    assert bool(jnp.all(jnp.isfinite(out)))
    print("KERNEL_OK")
</pallas_src>

<mosaic_0001>
module attributes {stable_mosaic.version = 11 : i64} {
  func.func @_transform_kernel(%arg0: i32, %arg1: i32, %arg2: memref<3xf32, #tpu.memory_space<smem>>, %arg3: memref<3xf32, #tpu.memory_space<smem>>, %arg4: memref<8x24xbf16, #tpu.memory_space<vmem>>, %arg5: memref<32x16xbf16, #tpu.memory_space<vmem>>, %arg6: memref<1x24x32xi8, #tpu.memory_space<vmem>>, %arg7: memref<1x8x16xf32, #tpu.memory_space<vmem>>) attributes {dimension_semantics = [#tpu.dimension_semantics<parallel>, #tpu.dimension_semantics<parallel>], iteration_bounds = array<i64: 3, 2>, scalar_prefetch = 0 : i64, scratch_operands = 0 : i64, tpu.core_type = #tpu.core_type<tc>, window_params = [{transform_indices = @transform_0, window_bounds = array<i64: 3>}, {transform_indices = @transform_1, window_bounds = array<i64: 3>}, {transform_indices = @transform_2, window_bounds = array<i64: 8, 24>}, {pipeline_mode = #tpu.pipeline_mode<synchronous>, transform_indices = @transform_3, window_bounds = array<i64: 32, 16>}, {transform_indices = @transform_4, window_bounds = array<i64: 1, 24, 32>}, {transform_indices = @transform_5, window_bounds = array<i64: 1, 8, 16>}]} {
    %c0 = arith.constant 0 : index
    %c0_0 = arith.constant 0 : index
    %c0_1 = arith.constant 0 : index
    %0 = vector.load %arg6[%c0, %c0_0, %c0_1] : memref<1x24x32xi8, #tpu.memory_space<vmem>>, vector<1x24x32xi8>
    %1 = vector.shape_cast %0 : vector<1x24x32xi8> to vector<24x32xi8>
    %2 = arith.sitofp %1 : vector<24x32xi8> to vector<24x32xbf16>
    %c0_2 = arith.constant 0 : index
    %c0_3 = arith.constant 0 : index
    %3 = vector.load %arg4[%c0_2, %c0_3] : memref<8x24xbf16, #tpu.memory_space<vmem>>, vector<8x24xbf16>
    %cst = arith.constant dense<0.000000e+00> : vector<8x32xf32>
    %4 = tpu.matmul %3, %2, %cst {dimension_numbers = #tpu.dot_dimension_numbers<[1], [0], [0], [1], [0, 0, 1, 1], [], []>} : vector<8x24xbf16>, vector<24x32xbf16>, vector<8x32xf32> -> vector<8x32xf32>
    %5 = arith.truncf %4 : vector<8x32xf32> to vector<8x32xbf16>
    %c0_4 = arith.constant 0 : index
    %c0_5 = arith.constant 0 : index
    %6 = vector.load %arg5[%c0_4, %c0_5] : memref<32x16xbf16, #tpu.memory_space<vmem>>, vector<32x16xbf16>
    %cst_6 = arith.constant dense<0.000000e+00> : vector<8x16xf32>
    %7 = tpu.matmul %5, %6, %cst_6 {dimension_numbers = #tpu.dot_dimension_numbers<[1], [0], [0], [1], [0, 0, 1, 1], [], []>} : vector<8x32xbf16>, vector<32x16xbf16>, vector<8x16xf32> -> vector<8x16xf32>
    %cst_7 = arith.constant 1.285000e+02 : f32
    %8 = vector.broadcast %cst_7 : f32 to vector<8x16xf32>
    %9 = arith.addf %7, %8 : vector<8x16xf32>
    %10 = math.floor %9 : vector<8x16xf32>
    %cst_8 = arith.constant 0.000000e+00 : f32
    %cst_9 = arith.constant 2.550000e+02 : f32
    %11 = vector.broadcast %cst_8 : f32 to vector<8x16xf32>
    %12 = arith.maximumf %11, %10 : vector<8x16xf32>
    %13 = vector.broadcast %cst_9 : f32 to vector<8x16xf32>
    %14 = arith.minimumf %13, %12 : vector<8x16xf32>
    %15 = arith.index_cast %arg0 : i32 to index
    %16 = memref.load %arg2[%15] : memref<3xf32, #tpu.memory_space<smem>>
    %17 = vector.broadcast %16 : f32 to vector<8x16xf32>
    %18 = arith.mulf %14, %17 : vector<8x16xf32>
    %19 = arith.index_cast %arg0 : i32 to index
    %20 = memref.load %arg3[%19] : memref<3xf32, #tpu.memory_space<smem>>
    %21 = vector.broadcast %20 : f32 to vector<8x16xf32>
    %22 = arith.subf %18, %21 : vector<8x16xf32>
    %c0_10 = arith.constant 0 : index
    %c0_11 = arith.constant 0 : index
    %c0_12 = arith.constant 0 : index
    %23 = vector.load %arg7[%c0_10, %c0_11, %c0_12] : memref<1x8x16xf32, #tpu.memory_space<vmem>>, vector<1x8x16xf32>
    %24 = vector.shape_cast %23 : vector<1x8x16xf32> to vector<8x16xf32>
    %25 = vector.shape_cast %22 : vector<8x16xf32> to vector<1x8x16xf32>
    tpu.vector_store %arg7[%c0_10, %c0_11, %c0_12], %25 {strides = array<i32>} : memref<1x8x16xf32, #tpu.memory_space<vmem>>, vector<1x8x16xf32>,
    return
  }
  func.func @transform_0(%arg0: i32, %arg1: i32) -> i32 {
    %c0_i32 = arith.constant 0 : i32
    %c0_i32_0 = arith.constant 0 : i32
    return %c0_i32 : i32
  }
  func.func @transform_1(%arg0: i32, %arg1: i32) -> i32 {
    %c0_i32 = arith.constant 0 : i32
    %c0_i32_0 = arith.constant 0 : i32
    return %c0_i32 : i32
  }
  func.func @transform_2(%arg0: i32, %arg1: i32) -> (i32, i32) {
    %c0_i32 = arith.constant 0 : i32
    %c0_i32_0 = arith.constant 0 : i32
    return %arg1, %c0_i32 : i32, i32
  }
  func.func @transform_3(%arg0: i32, %arg1: i32) -> (i32, i32) {
    %c0_i32 = arith.constant 0 : i32
    %c0_i32_0 = arith.constant 0 : i32
    %c0_i32_1 = arith.constant 0 : i32
    return %c0_i32, %c0_i32_0 : i32, i32
  }
  func.func @transform_4(%arg0: i32, %arg1: i32) -> (i32, i32, i32) {
    %c0_i32 = arith.constant 0 : i32
    %c0_i32_0 = arith.constant 0 : i32
    %c0_i32_1 = arith.constant 0 : i32
    return %arg0, %c0_i32, %c0_i32_0 : i32, i32, i32
  }
  func.func @transform_5(%arg0: i32, %arg1: i32) -> (i32, i32, i32) {
    %c0_i32 = arith.constant 0 : i32
    %c0_i32_0 = arith.constant 0 : i32
    return %arg0, %arg1, %c0_i32 : i32, i32, i32
  }
}

</mosaic_0001>

<llo_original>
// kernel: tpu_custom_call.1
$region0: #{tpu_custom_call.1}
  #allocation0 [shape = 'u32[]', space=smem, size = 0x4, offset = 0x4, fixed_abs, tag = 'smem constant byte address 0x4 - core index']
  #allocation1 [shape = 'u32[144,128]{1,0:T(1,128)}', space=vmem, size = 0x12000, scoped, tag = 'internal scratch']
  %s0 = inlined_call_operand.vmem [shape: f32[3], index: 0, kind: input, shape index: {}]
  %s1 = inlined_call_operand.vmem [shape: f32[3], index: 1, kind: input, shape index: {}]
  %s2 = inlined_call_operand.vmem [shape: bf16[16,24], index: 2, kind: input, shape index: {}]
  %s3 = inlined_call_operand.vmem [shape: bf16[32,16], index: 3, kind: input, shape index: {}]
  %s4 = inlined_call_operand.vmem [shape: s8[3,24,32], index: 4, kind: input, shape index: {}]
  %s5 = inlined_call_operand.hbm [shape: f32[3,16,16], index: 5, kind: output, shape index: {}]
  %s6 = sld [smem:[#allocation0]]
  $region61: #{tpu_custom_call.1} parent=0
    _
  %s8 = ssub.s32 1, %s6
  %s9 = scalar_select 0, %s8, %s6
  $region1: #{tpu_custom_call.1} parent=0
    #allocation2 [shape = 'u8[512]{0}', space=smem, size = 0x200, scoped, tag = 'input window, operand 0, single buffered']
    #allocation3 [shape = 's32[2]{0}', space=sflag, size = 0x8, scoped, tag = 'scoped memory for tpu_custom_call.1']
    #allocation4 [shape = 's32[2]{0}', space=sflag, size = 0x8, scoped, tag = 'scoped memory for tpu_custom_call.1']
    #allocation5 [shape = 'u8[512]{0}', space=smem, size = 0x200, scoped, tag = 'input window, operand 1, single buffered']
    #allocation6 [shape = 's32[1]{0}', space=sflag, size = 0x4, scoped, tag = 'scoped memory for tpu_custom_call.1']
    #allocation7 [shape = 'u8[8192]{0}', space=vmem, size = 0x2000, scoped, tag = 'output window, operand 0']
    %10 = vsyncpa [#allocation4], 0
    %11 = vsyncpa [#allocation6], 0
    %12 = vsyncpa [#allocation3], 0
    %s13 = scalar_lea.sflag [#allocation3], 1
    %14 = vsyncpa %s13, 0
    loop: start=0, step=1, limit=8
    $region2: #{tpu_custom_call.1} parent=1 // loop_pre_header
      _
    $region3: #{tpu_custom_call.1} parent=1 // loop_header
      %s16 = sphi 0, %s20
      %p17 = scmp.ge.s32.totalorder %s16, 8
      %s23 = sphi 0, %s35
      %s24 = sphi 0, %s31
      %s25 = sphi 0, %s23
      %s26 = sphi 0, %s24
      %s27 = sphi 0, %s25
      %s28 = sphi 0, %s26
      %s36 = sphi 0, %s36
      %s38 = sphi 0, %s36
      %s39 = sphi 0, %s38
      %s53 = sphi 0, %s39
      %s57 = sphi 0, %s57
      %s59 = sphi 0, %s57
      %s60 = sphi 0, %s59
      %s74 = sphi 0, %s60
      %s80 = sphi 0, %s82
      %s83 = sphi 0, %s80
      %s84 = sphi 0, %s83
      %s100 = sphi 0, %s84
      %s104 = sphi 0, %s104
      %s106 = sphi 0, %s104
      %s107 = sphi 0, %s106
      %s121 = sphi 0, %s107
      %s127 = sphi 0, %s129
      %s130 = sphi 0, %s127
      %s131 = sphi 0, %s130
      %s147 = sphi 0, %s131
      %s155 = sphi 0, %s157
      %s158 = sphi 0, %s155
      %s159 = sphi 0, %s158
      %s175 = sphi 0, %s159
    $region4: #{tpu_custom_call.1} parent=1 // loop_header_branch
      %19 = sbr.rel (%p17) target = $region8
    $region5: #{tpu_custom_call.1} parent=1 // loop_body
      %s21 = ssub.s32 %s16, 1
      %s22 = ssub.s32 %s16, 2
      %s29 = sadd.s32 1, %s24
      %p30 = scmp.ge.s32.totalorder %s29, 2
      %s31 = scalar_select %p30, 0, %s29
      %s32 = sadd.s32 1, %s23
      %s33 = scalar_select %p30, %s32, %s23
      %p34 = scmp.ge.s32.totalorder %s33, 3
      %s35 = scalar_select %p34, 0, %s33
      %s37 = sadd.s32 %s36, 1
      %p40 = scmp.eq.s32.totalorder %s16, 5
      %p41 = scmp.ne.s32.totalorder %s36, %s38
      %p42 = scmp.eq.s32.totalorder %s16, 0
      %p43 = por %p41, %p42
      %p44 = scmp.ne.s32.totalorder %s36, %s38
      %p45 = scmp.eq.s32.totalorder %s21, 5
      %p46 = por %p44, %p45
      %p47 = scmp.ne.s32.totalorder %s38, %s39
      %p48 = scmp.eq.s32.totalorder %s21, 0
      %p49 = por %p47, %p48
      %p50 = scmp.ne.s32.totalorder %s38, %s39
      %p51 = scmp.eq.s32.totalorder %s22, 5
      %p52 = por %p50, %p51
      %p54 = scmp.ne.s32.totalorder %s39, %s53
      %p55 = scmp.eq.s32.totalorder %s22, 0
      %p56 = por %p54, %p55
      %s58 = sadd.s32 %s57, 1
      %p61 = scmp.eq.s32.totalorder %s16, 5
      %p62 = scmp.ne.s32.totalorder %s57, %s59
      %p63 = scmp.eq.s32.totalorder %s16, 0
      %p64 = por %p62, %p63
      %p65 = scmp.ne.s32.totalorder %s57, %s59
      %p66 = scmp.eq.s32.totalorder %s21, 5
      %p67 = por %p65, %p66
      %p68 = scmp.ne.s32.totalorder %s59, %s60
      %p69 = scmp.eq.s32.totalorder %s21, 0
      %p70 = por %p68, %p69
      %p71 = scmp.ne.s32.totalorder %s59, %s60
      %p72 = scmp.eq.s32.totalorder %s22, 5
      %p73 = por %p71, %p72
      %p75 = scmp.ne.s32.totalorder %s60, %s74
      %p76 = scmp.eq.s32.totalorder %s22, 0
      %p77 = por %p75, %p76
      %s78 = ssub.s32 %s24, %s31
      %p79 = scmp.eq.s32.totalorder %s78, 0
      %s81 = sadd.s32 %s80, 1
      %s82 = scalar_select %p79, %s80, %s81
      %p85 = pneg %p79
      %p86 = scmp.eq.s32.totalorder %s16, 5
      %p87 = por %p85, %p86
      %p88 = scmp.ne.s32.totalorder %s80, %s83
      %p89 = scmp.eq.s32.totalorder %s16, 0
      %p90 = por %p88, %p89
      %p91 = scmp.ne.s32.totalorder %s80, %s83
      %p92 = scmp.eq.s32.totalorder %s21, 5
      %p93 = por %p91, %p92
      %p94 = scmp.ne.s32.totalorder %s83, %s84
      %p95 = scmp.eq.s32.totalorder %s21, 0
      %p96 = por %p94, %p95
      %p97 = scmp.ne.s32.totalorder %s83, %s84
      %p98 = scmp.eq.s32.totalorder %s22, 5
      %p99 = por %p97, %p98
      %p101 = scmp.ne.s32.totalorder %s84, %s100
      %p102 = scmp.eq.s32.totalorder %s22, 0
      %p103 = por %p101, %p102
      %s105 = sadd.s32 %s104, 1
      %p108 = scmp.eq.s32.totalorder %s16, 5
      %p109 = scmp.ne.s32.totalorder %s104, %s106
      %p110 = scmp.eq.s32.totalorder %s16, 0
      %p111 = por %p109, %p110
      %p112 = scmp.ne.s32.totalorder %s104, %s106
      %p113 = scmp.eq.s32.totalorder %s21, 5
      %p114 = por %p112, %p113
      %p115 = scmp.ne.s32.totalorder %s106, %s107
      %p116 = scmp.eq.s32.totalorder %s21, 0
      %p117 = por %p115, %p116
      %p118 = scmp.ne.s32.totalorder %s106, %s107
      %p119 = scmp.eq.s32.totalorder %s22, 5
      %p120 = por %p118, %p119
      %p122 = scmp.ne.s32.totalorder %s107, %s121
      %p123 = scmp.eq.s32.totalorder %s22, 0
      %p124 = por %p122, %p123
      %s125 = ssub.s32 %s23, %s35
      %p126 = scmp.eq.s32.totalorder %s125, 0
      %s128 = sadd.s32 %s127, 1
      %s129 = scalar_select %p126, %s127, %s128
      %p132 = pneg %p126
      %p133 = scmp.eq.s32.totalorder %s16, 5
      %p134 = por %p132, %p133
      %p135 = scmp.ne.s32.totalorder %s127, %s130
      %p136 = scmp.eq.s32.totalorder %s16, 0
      %p137 = por %p135, %p136
      %p138 = scmp.ne.s32.totalorder %s127, %s130
      %p139 = scmp.eq.s32.totalorder %s21, 5
      %p140 = por %p138, %p139
      %p141 = scmp.ne.s32.totalorder %s130, %s131
      %p142 = scmp.eq.s32.totalorder %s21, 0
      %p143 = por %p141, %p142
      %p144 = scmp.ne.s32.totalorder %s130, %s131
      %p145 = scmp.eq.s32.totalorder %s22, 5
      %p146 = por %p144, %p145
      %p148 = scmp.ne.s32.totalorder %s131, %s147
      %p149 = scmp.eq.s32.totalorder %s22, 0
      %p150 = por %p148, %p149
      %s151 = ssub.s32 %s23, %s35
      %s152 = ssub.s32 %s24, %s31
      %s153 = sor.u32 %s151, %s152
      %p154 = scmp.eq.s32.totalorder %s153, 0
      %s156 = sadd.s32 %s155, 1
      %s157 = scalar_select %p154, %s155, %s156
      %p160 = pneg %p154
      %p161 = scmp.eq.s32.totalorder %s16, 5
      %p162 = por %p160, %p161
      %p163 = scmp.ne.s32.totalorder %s155, %s158
      %p164 = scmp.eq.s32.totalorder %s16, 0
      %p165 = por %p163, %p164
      %p166 = scmp.ne.s32.totalorder %s155, %s158
      %p167 = scmp.eq.s32.totalorder %s21, 5
      %p168 = por %p166, %p167
      %p169 = scmp.ne.s32.totalorder %s158, %s159
      %p170 = scmp.eq.s32.totalorder %s21, 0
      %p171 = por %p169, %p170
      %p172 = scmp.ne.s32.totalorder %s158, %s159
      %p173 = scmp.eq.s32.totalorder %s22, 5
      %p174 = por %p172, %p173
      %p176 = scmp.ne.s32.totalorder %s159, %s175
      %p177 = scmp.eq.s32.totalorder %s22, 0
      %p178 = por %p176, %p177
      %p179 = scmp.le.s32.totalorder 1, %s16
      %p180 = scmp.lt.s32.totalorder %s16, 7
      %p181 = pnand %p179, %p180
      %p182 = pneg %p181
      // Predicated region
      $region9: #{tpu_custom_call.1} parent=5 // pred_check
        _
      $region10: #{tpu_custom_call.1} parent=5 // pred_check_branch
        %184 = sbr.rel (%p181) target = $region12
      $region11: #{tpu_custom_call.1} parent=5 // pred_region
        %s185 = ssub.s32 %s16, 1
        // Predicated region
        $region13: #{tpu_custom_call.1} parent=11 // pred_check
          %p186 = pneg %p49
        $region14: #{tpu_custom_call.1} parent=11 // pred_check_branch
          %188 = sbr.rel (%p186) target = $region16
        $region15: #{tpu_custom_call.1} parent=11 // pred_region
          %s190 = ssub.s32 16, 16
          %191 = vsyncadd [#allocation4], %s190
          %s193 = sshll.u32 %s0, 4
          %s194 = int_to_ptr.vmem [resolvable:$true] %s193
          %196 = dma.vmem_to_smem %s194, 16, [#allocation2], [#allocation4]
        $region16: #{tpu_custom_call.1} parent=11 // pred_fallthru
          _
        // Predicated region
        $region17: #{tpu_custom_call.1} parent=11 // pred_check
          %p197 = pneg %p70
        $region18: #{tpu_custom_call.1} parent=11 // pred_check_branch
          %199 = sbr.rel (%p197) target = $region20
        $region19: #{tpu_custom_call.1} parent=11 // pred_region
          %s201 = ssub.s32 16, 16
          %202 = vsyncadd [#allocation6], %s201
          %s204 = sshll.u32 %s1, 4
          %s205 = int_to_ptr.vmem [resolvable:$true] %s204
          %207 = dma.vmem_to_smem %s205, 16, [#allocation5], [#allocation6]
        $region20: #{tpu_custom_call.1} parent=11 // pred_fallthru
          _
        // Predicated region
        $region21: #{tpu_custom_call.1} parent=11 // pred_check
          %p208 = pneg %p117
        $region22: #{tpu_custom_call.1} parent=11 // pred_check_branch
          %210 = sbr.rel (%p208) target = $region24
        $region23: #{tpu_custom_call.1} parent=11 // pred_region
          _
        $region24: #{tpu_custom_call.1} parent=11 // pred_fallthru
          _
      $region12: #{tpu_custom_call.1} parent=5 // pred_fallthru
        _
      %p211 = scmp.lt.s32.totalorder %s16, 6
      // Predicated region
      $region25: #{tpu_custom_call.1} parent=5 // pred_check
        %p212 = pneg %p211
      $region26: #{tpu_custom_call.1} parent=5 // pred_check_branch
        %214 = sbr.rel (%p212) target = $region28
      $region27: #{tpu_custom_call.1} parent=5 // pred_region
        // Predicated region
        $region29: #{tpu_custom_call.1} parent=27 // pred_check
          %p215 = pneg %p90
        $region30: #{tpu_custom_call.1} parent=27 // pred_check_branch
          %217 = sbr.rel (%p215) target = $region32
        $region31: #{tpu_custom_call.1} parent=27 // pred_region
          %p218 = scmp.lt.s32.totalorder %s24, 1
          %s219 = scalar_select %p218, %s24, 1
          %s220 = smul.addr %s219, 4
          %s221 = scalar_lea.vmem %s2, %s220
        $region32: #{tpu_custom_call.1} parent=27 // pred_fallthru
          _
        // Predicated region
        $region33: #{tpu_custom_call.1} parent=27 // pred_check
          %p222 = pneg %p137
        $region34: #{tpu_custom_call.1} parent=27 // pred_check_branch
          %224 = sbr.rel (%p222) target = $region36
        $region35: #{tpu_custom_call.1} parent=27 // pred_region
          %p225 = scmp.lt.s32.totalorder %s23, 2
          %s226 = scalar_select %p225, %s23, 2
          %s227 = smul.addr %s226, 3
          %s228 = smul.addr %s227, 2
          %s229 = scalar_lea.vmem %s4, %s228
        $region36: #{tpu_custom_call.1} parent=27 // pred_fallthru
          _
      $region28: #{tpu_custom_call.1} parent=5 // pred_fallthru
        _
      %p230 = scmp.le.s32.totalorder 1, %s16
      %p231 = scmp.lt.s32.totalorder %s16, 7
      %p232 = pnand %p230, %p231
      %p233 = pneg %p232
      // Predicated region
      $region37: #{tpu_custom_call.1} parent=5 // pred_check
        _
      $region38: #{tpu_custom_call.1} parent=5 // pred_check_branch
        %235 = sbr.rel (%p232) target = $region40
      $region39: #{tpu_custom_call.1} parent=5 // pred_region
        %s236 = ssub.s32 %s16, 1
        // Predicated region
        $region41: #{tpu_custom_call.1} parent=39 // pred_check
          %p237 = pneg %p49
        $region42: #{tpu_custom_call.1} parent=39 // pred_check_branch
          %239 = sbr.rel (%p237) target = $region44
        $region43: #{tpu_custom_call.1} parent=39 // pred_region
          %240 = dma.done [#allocation4], 16
        $region44: #{tpu_custom_call.1} parent=39 // pred_fallthru
          _
        // Predicated region
        $region45: #{tpu_custom_call.1} parent=39 // pred_check
          %p241 = pneg %p70
        $region46: #{tpu_custom_call.1} parent=39 // pred_check_branch
          %243 = sbr.rel (%p241) target = $region48
        $region47: #{tpu_custom_call.1} parent=39 // pred_region
          %244 = dma.done [#allocation6], 16
        $region48: #{tpu_custom_call.1} parent=39 // pred_fallthru
          _
        %245 = sfence
        %p246 = pneg %p49
        %p247 = pneg %p46
        %p248 = pneg %p70
        %p249 = pneg %p67
        %p250 = scmp.lt.s32.totalorder %s26, 1
        %s251 = scalar_select %p250, %s26, 1
        %s252 = smul.addr %s251, 4
        %s253 = scalar_lea.vmem %s2, %s252
        %p254 = pneg %p96
        %p255 = pneg %p93
        %p256 = pneg %p117
        %p257 = pneg %p114
        %p258 = scmp.lt.s32.totalorder %s25, 2
        %s259 = scalar_select %p258, %s25, 2
        %s260 = smul.addr %s259, 3
        %s261 = smul.addr %s260, 2
        %s262 = scalar_lea.vmem %s4, %s261
        %p263 = pneg %p143
        %p264 = pneg %p140
        %p265 = pneg %p171
        %p266 = pneg %p168
        %s267 = sand.u32 %s158, 1
        %s268 = scalar_lea.sflag [#allocation3], %s267
        %s269 = sand.u32 %s158, 1
        %s270 = smul.addr %s269, 8
        %s271 = scalar_lea.vmem [#allocation7], %s270
        %p272 = scmp.lt.s32.totalorder %s26, 1
        %s273 = scalar_select %p272, %s26, 1
        %s274 = smul.addr %s273, 4
        %s275 = scalar_lea.vmem %s2, %s274
        %p276 = scmp.lt.s32.totalorder %s25, 2
        %s277 = scalar_select %p276, %s25, 2
        %s278 = smul.addr %s277, 3
        %s279 = smul.addr %s278, 2
        %s280 = scalar_lea.vmem %s4, %s279
        %v282 = vld [vmem:[%s280] sm:$0x3]
        %v283 = vld [vmem:[%s280 + $0x2] sm:$0x3]
        %v284 = vld [vmem:[%s280 + $0x4] sm:$0x3]
        %v285 = vunpack.c.l.s8.bf16 %v282
        %v286 = vunpack.c.l.s8.bf16 %v283
        %v287 = vunpack.c.l.s8.bf16 %v284
        %v288 = vld [vmem:[%s275] sm:$0xf]
        %v292 = vunpack.c.l.b16 %v285
        %v293 = vunpack.c.l.b16 %v286
        %v294 = vunpack.c.l.b16 %v287
        %v295 = vpack.c.b16 %v293, %v292
        %v296 = vpack.c.b16 %v294, %v294
        %vm298 = vcmask 195584
        %v300 = vsel %vm298, %v288, 0
        %vm302 = vcmask 1043456
        %v304 = vsel %vm302, %v296, 0
        %306 = vmatprep.subr.bf16.mxu0 0
        %307 = vmatpush1.bf16.msra.mxu0 %v295
        %308 = vmatprep.subr.bf16.mxu0 0
        %309 = vmatpush1.bf16.msra.mxu0 %v304
        %310 = vmatprep.subr.bf16.mxu0 0
        %311 = vmatpush1.bf16.msra.mxu0 0
        %312 = vmatprep.subr.bf16.mxu0 0
        %313 = vmatpush1.bf16.msra.mxu0 0
        %314 = vmatprep.subr.bf16.mxu0 0
        %315 = vmatpush1.bf16.msra.mxu0 0
        %316 = vmatprep.subr.bf16.mxu0 0
        %317 = vmatpush1.bf16.msra.mxu0 0
        %318 = vmatprep.subr.bf16.mxu0 0
        %319 = vmatpush1.bf16.msra.mxu0 0
        %320 = vmatprep.subr.bf16.mxu0 0
        %321 = vmatpush1.bf16.msra.mxu0 0
        %322 = vmatprep.subr.bf16.mxu0 0
        %323 = vmatpush1.bf16.msra.mxu0 0
        %324 = vmatprep.subr.bf16.mxu0 0
        %325 = vmatpush1.bf16.msra.mxu0 0
        %326 = vmatprep.subr.bf16.mxu0 0
        %327 = vmatpush1.bf16.msra.mxu0 0
        %328 = vmatprep.subr.bf16.mxu0 0
        %329 = vmatpush1.bf16.msra.mxu0 0
        %330 = vmatprep.subr.bf16.mxu0 0
        %331 = vmatpush1.bf16.msra.mxu0 0
        %332 = vmatprep.subr.bf16.mxu0 0
        %333 = vmatpush1.bf16.msra.mxu0 0
        %334 = vmatprep.subr.bf16.mxu0 0
        %335 = vmatpush1.bf16.msra.mxu0 0
        %336 = vmatprep.subr.bf16.mxu0 0
        %337 = vmatpush1.bf16.msra.mxu0 0
        %338 = vmatprep.mubr.bf16.mxu0 0
        %339 = vmatmul.mubr.bf16.gmra.mrb[0].mxu0 %v300
        %v340 = vpop.f32.mrb[0].mxu0
        %v341 = vadd.f32 0.0, %v340
        %v342 = vpop.f32.mrb[0].mxu0
        %v343 = vpop.f32.mrb[0].mxu0
        %v344 = vpop.f32.mrb[0].mxu0
        %345 = vdwg.mxu0
        %v346 = vpack.c.bf16 %v341, %v341
        %v347 = vld [vmem:[%s3] sm:$0xf]
        %v348 = vld [vmem:[%s3 + $0x4] sm:$0xf]
        %v349 = vld [vmem:[%s3 + $0x8] sm:$0xf]
        %v350 = vld [vmem:[%s3 + $0xc] sm:$0xf]
        %v355 = vunpack.c.l.b16 %v347
        %v356 = vunpack.c.l.b16 %v348
        %v357 = vunpack.c.l.b16 %v349
        %v358 = vunpack.c.l.b16 %v350
        %v359 = vpack.c.b16 %v356, %v355
        %v360 = vpack.c.b16 %v358, %v357
        %vm363 = vcmask 261120
        %v365 = vsel %vm363, %v346, 0
        %367 = vmatprep.subr.bf16.mxu0 0
        %368 = vmatpush1.bf16.msra.mxu0 %v359
        %369 = vmatprep.subr.bf16.mxu0 0
        %370 = vmatpush1.bf16.msra.mxu0 %v360
        %371 = vmatprep.subr.bf16.mxu0 0
        %372 = vmatpush1.bf16.msra.mxu0 0
        %373 = vmatprep.subr.bf16.mxu0 0
        %374 = vmatpush1.bf16.msra.mxu0 0
        %375 = vmatprep.subr.bf16.mxu0 0
        %376 = vmatpush1.bf16.msra.mxu0 0
        %377 = vmatprep.subr.bf16.mxu0 0
        %378 = vmatpush1.bf16.msra.mxu0 0
        %379 = vmatprep.subr.bf16.mxu0 0
        %380 = vmatpush1.bf16.msra.mxu0 0
        %381 = vmatprep.subr.bf16.mxu0 0
        %382 = vmatpush1.bf16.msra.mxu0 0
        %383 = vmatprep.subr.bf16.mxu0 0
        %384 = vmatpush1.bf16.msra.mxu0 0
        %385 = vmatprep.subr.bf16.mxu0 0
        %386 = vmatpush1.bf16.msra.mxu0 0
        %387 = vmatprep.subr.bf16.mxu0 0
        %388 = vmatpush1.bf16.msra.mxu0 0
        %389 = vmatprep.subr.bf16.mxu0 0
        %390 = vmatpush1.bf16.msra.mxu0 0
        %391 = vmatprep.subr.bf16.mxu0 0
        %392 = vmatpush1.bf16.msra.mxu0 0
        %393 = vmatprep.subr.bf16.mxu0 0
        %394 = vmatpush1.bf16.msra.mxu0 0
        %395 = vmatprep.subr.bf16.mxu0 0
        %396 = vmatpush1.bf16.msra.mxu0 0
        %397 = vmatprep.subr.bf16.mxu0 0
        %398 = vmatpush1.bf16.msra.mxu0 0
        %399 = vmatprep.mubr.bf16.mxu0 0
        %400 = vmatmul.mubr.bf16.gmra.mrb[0].mxu0 %v365
        %v401 = vpop.f32.mrb[0].mxu0
        %v402 = vadd.f32 128.5, %v401
        %v403 = vpop.f32.mrb[0].mxu0
        %v404 = vpop.f32.mrb[0].mxu0
        %v405 = vpop.f32.mrb[0].mxu0
        %406 = vdwg.mxu0
        %v407 = vfloor.f32 %v402
        %v408 = vmax.f32 %v407, 0.0
        %v409 = vmin.f32 %v408, 255.0
        %s410 = sld [smem:[#allocation2 + %s25]]
        %v411 = vstv %s410
        %v412 = vmul.f32 %v409, %v411
        %s413 = sld [smem:[#allocation5 + %s25]]
        %v414 = vstv %s413
        %v415 = vsub.f32 %v412, %v414
        %vm416 = vcmask 130048
        %417 = vst.msk [vmem:[%s271] sm:$0xff] %vm416, %v415
        %s418 = sand.u32 %s158, 1
        %s419 = scalar_lea.sflag [#allocation3], %s418
        %s420 = sand.u32 %s158, 1
        %s421 = smul.addr %s420, 8
        %s422 = scalar_lea.vmem [#allocation7], %s421
        // Predicated region
        $region49: #{tpu_custom_call.1} parent=39 // pred_check
          %p423 = pneg %p168
        $region50: #{tpu_custom_call.1} parent=39 // pred_check_branch
          %425 = sbr.rel (%p423) target = $region52
        $region51: #{tpu_custom_call.1} parent=39 // pred_region
          %s427 = ssub.s32 128, 128
          %428 = vsyncadd %s419, %s427
          %s429 = smul.addr %s25, 2
          %s430 = sadd.s32 %s26, %s429
          %s431 = smul.addr %s430, 128
          %s432 = scalar_lea.hbm %s5, %s431
          %s434 = sshll.u32 %s422, 4
          %s435 = int_to_ptr.vmem [resolvable:$true] %s434
          %437 = dma.vmem_to_hbm [thread:$0]  %s435, 128, %s432, %s419
        $region52: #{tpu_custom_call.1} parent=39 // pred_fallthru
          _
      $region40: #{tpu_custom_call.1} parent=5 // pred_fallthru
        _
      %p438 = scmp.le.s32.totalorder 2, %s16
      // Predicated region
      $region53: #{tpu_custom_call.1} parent=5 // pred_check
        %p439 = pneg %p438
      $region54: #{tpu_custom_call.1} parent=5 // pred_check_branch
        %441 = sbr.rel (%p439) target = $region56
      $region55: #{tpu_custom_call.1} parent=5 // pred_region
        %s442 = ssub.s32 %s16, 2
        // Predicated region
        $region57: #{tpu_custom_call.1} parent=55 // pred_check
          %p443 = pneg %p174
        $region58: #{tpu_custom_call.1} parent=55 // pred_check_branch
          %445 = sbr.rel (%p443) target = $region60
        $region59: #{tpu_custom_call.1} parent=55 // pred_region
          %s446 = sand.u32 %s159, 1
          %s447 = scalar_lea.sflag [#allocation3], %s446
          %s448 = sand.u32 %s159, 1
          %s449 = smul.addr %s448, 8
          %s450 = scalar_lea.vmem [#allocation7], %s449
          %451 = dma.done %s447, 128
        $region60: #{tpu_custom_call.1} parent=55 // pred_fallthru
          _
      $region56: #{tpu_custom_call.1} parent=5 // pred_fallthru
        _
    $region6: #{tpu_custom_call.1} parent=1 // loop_footer
      %s20 = sadd.s32 1, %s16
    $region7: #{tpu_custom_call.1} parent=1 // loop_footer_branch
      %15 = sbr.rel target = $region3
    $region8: #{tpu_custom_call.1} parent=1 // loop_exit
      _
    %452 = vsyncpa [#allocation3], 1
    %s453 = scalar_lea.sflag [#allocation3], 1
    %454 = vsyncpa %s453, 1
    %455 = vsyncpa [#allocation4], 1
    %s456 = scalar_lea.sflag [#allocation4], 1
    %457 = vsyncpa %s456, 1
    %458 = vsyncpa [#allocation6], 1

</llo_original>
